<compile_context>
chip_gen: v6e
topology: v6e:2x2x1
jax: 0.10.0
libtpu: 0.0.40
codegen_flags: <defaults>
</compile_context>

<pallas_src>
import jax
import jax.numpy as jnp
import numpy as np
from jax.experimental import pallas as pl
from jax.experimental.pallas import tpu as pltpu

BETA = 1.5
W1 = BETA ** 2 / (1.0 + BETA ** 2)   # beta^2 / (1 + beta^2)
W2 = 1.0 / (1.0 + BETA ** 2)         # 1 / (1 + beta^2)

ROW_TARGET = 256    # (b*c) planes per block; multiple of 8 sublanes
LANE_TARGET = 1024  # H*W elements per reduction chunk; multiple of 128 lanes


def _make_kernel(hw, lane_block, needs_lane_mask):
    """Builds the kernel with static H*W / chunking baked in."""

    def kernel(net_ref, tgt_ref, pos_ref, out_ref,
               s_tn, s_fp, s_fn, m_t, m_p):
        k = pl.program_id(1)

        @pl.when(k == 0)
        def _():
            s_tn[...] = jnp.zeros_like(s_tn)
            s_fp[...] = jnp.zeros_like(s_fp)
            s_fn[...] = jnp.zeros_like(s_fn)
            m_t[...] = jnp.full_like(m_t, -jnp.inf)
            m_p[...] = jnp.full_like(m_p, -jnp.inf)

        n = net_ref[...].astype(jnp.float32)   # (rows, lane_block)
        t = tgt_ref[...].astype(jnp.float32)
        p = pos_ref[...].astype(jnp.float32)

        tn = t * n
        fp_e = n - tn          # == (1 - t) * n   elementwise
        fn_e = t - tn          # == t * (1 - n)   elementwise

        if needs_lane_mask:
            lane = (jax.lax.broadcasted_iota(jnp.int32, (1, lane_block), 1)
                    + k * lane_block)
            valid = lane < hw                                # (1, lane_block)
            tn = jnp.where(valid, tn, 0.0)
            fp_e = jnp.where(valid, fp_e, 0.0)
            fn_e = jnp.where(valid, fn_e, 0.0)
            t_m = jnp.where(valid, t, -jnp.inf)
            p_m = jnp.where(valid, p, -jnp.inf)
        else:
            t_m, p_m = t, p

        s_tn[...] += jnp.sum(tn, axis=-1, keepdims=True)
        s_fp[...] += jnp.sum(fp_e, axis=-1, keepdims=True)
        s_fn[...] += jnp.sum(fn_e, axis=-1, keepdims=True)
        m_t[...] = jnp.maximum(m_t[...], jnp.max(t_m, axis=-1, keepdims=True))
        m_p[...] = jnp.maximum(m_p[...], jnp.max(p_m, axis=-1, keepdims=True))

        @pl.when(k == pl.num_programs(1) - 1)
        def _():
            mol = s_tn[...]                                   # (rows, 1)
            denom = mol + W1 * s_fn[...] + W2 * s_fp[...]
            loss = 1.0 - mol / denom
            # `continue` branch of the PyTorch loop: skip a class iff
            # max(target) == 0 and max(max_positiones) == 0.
            skip = jnp.logical_and(m_t[...] == 0.0, m_p[...] == 0.0)
            loss = jnp.where(skip, 0.0, loss)
            out_ref[...] = jnp.broadcast_to(loss, out_ref.shape)

    return kernel


def mismatch_loss(net_out, target, max_positiones):
    """JAX/Pallas equivalent of Mismatch_loss.forward (NCHW inputs)."""
    B, C, H, W = net_out.shape
    HW = H * W
    R = B * C

    # Free layout plumbing: one (image, class) plane per sublane row.
    net = net_out.reshape(R, HW)
    tgt = target.reshape(R, HW)
    pos = max_positiones.reshape(R, HW)

    # Row blocking: multiple of 8 (or the full extent), aiming for >=2 blocks
    # so v7x's two TensorCores both get work on the "parallel" axis.
    if R < 16:
        row_block = R
    else:
        row_block = min(ROW_TARGET, ((R + 15) // 16) * 8)

    # Lane blocking: single full-extent chunk for small images, otherwise
    # fixed multiple-of-128 chunks forming the trailing reduction axis.
    lane_block = HW if HW <= LANE_TARGET else LANE_TARGET
    needs_lane_mask = (HW % lane_block) != 0

    grid = (pl.cdiv(R, row_block), pl.cdiv(HW, lane_block))
    kernel = _make_kernel(HW, lane_block, needs_lane_mask)

    in_spec = pl.BlockSpec((row_block, lane_block), lambda i, k: (i, k))
    per_row = pl.pallas_call(
        kernel,
        out_shape=jax.ShapeDtypeStruct((R, 128), jnp.float32),
        grid=grid,
        in_specs=[in_spec, in_spec, in_spec],
        out_specs=pl.BlockSpec((row_block, 128), lambda i, k: (i, 0)),
        scratch_shapes=[pltpu.VMEM((row_block, 1), jnp.float32)
                        for _ in range(5)],
        compiler_params=pltpu.CompilerParams(
            dimension_semantics=("parallel", "arbitrary")),
    )(net, tgt, pos)

    # Tiny epilogue in plain JAX on the (B, C) result.
    losses = per_row[:, 0].reshape(B, C)
    nonzero = jnp.sum((losses != 0.0).astype(jnp.float32), axis=1)
    img_losses = jnp.sum(losses, axis=1) / nonzero   # losses.sum()/count_nonzero
    return jnp.sum(img_losses) / B                   # img_losses.sum()/img_number


# ---------------------------------------------------------------------------
# Pure-numpy reference (mirrors the PyTorch loop) for a sanity check.
# ---------------------------------------------------------------------------
def mismatch_loss_ref(net_out, target, max_positiones):
    net_out = np.asarray(net_out, np.float32)
    target = np.asarray(target, np.float32)
    mp = np.asarray(max_positiones, np.float32)
    B, C = target.shape[:2]
    img_losses = np.zeros(B, np.float32)
    for j in range(B):
        losses = np.zeros(C, np.float32)
        for i in range(C):
            if target[j, i].max() == 0 and mp[j, i].max() == 0:
                continue
            t, n = target[j, i], net_out[j, i]
            fp = ((1.0 - t) * n).sum()
            fn = (t * (1.0 - n)).sum()
            mol = (t * n).sum()
            denom = mol + W1 * fn + W2 * fp
            losses[i] = 1.0 - mol / denom
        img_losses[j] = losses.sum() / np.count_nonzero(losses)
    return img_losses.sum() / B


if __name__ == "__main__":
    B, C, H, W = 2, 4, 16, 16
    key = jax.random.PRNGKey(0)
    k1, k2, k3 = jax.random.split(key, 3)

    # net_out: sigmoid-like probabilities in [0, 1]
    net_out = jax.nn.sigmoid(jax.random.normal(k1, (B, C, H, W), jnp.float32))

    # target: binary masks; classes 2 and 3 are empty (all zero)
    target = (jax.random.uniform(k2, (B, C, H, W)) > 0.7).astype(jnp.float32)
    target = target.at[:, 2:, :, :].set(0.0)

    # max_positiones: class 2 gets a nonzero marker (forces loss computation
    # even with empty target); class 3 stays all-zero (skipped branch).
    max_positiones = jnp.zeros((B, C, H, W), jnp.float32)
    max_positiones = max_positiones.at[:, 2, 0, 0].set(1.0)

    out = mismatch_loss(net_out, target, max_positiones)
    out = jax.block_until_ready(out)

    ref = mismatch_loss_ref(net_out, target, max_positiones)
    assert np.allclose(np.asarray(out), ref, rtol=1e-4, atol=1e-5), (out, ref)

    print("KERNEL_OK")
</pallas_src>

<mosaic_0001>
module attributes {stable_mosaic.version = 11 : i64} {
  func.func @kernel(%arg0: i32, %arg1: i32, %arg2: memref<8x256xf32, #tpu.memory_space<vmem>>, %arg3: memref<8x256xf32, #tpu.memory_space<vmem>>, %arg4: memref<8x256xf32, #tpu.memory_space<vmem>>, %arg5: memref<8x128xf32, #tpu.memory_space<vmem>>, %arg6: memref<8x1xf32, #tpu.memory_space<vmem>>, %arg7: memref<8x1xf32, #tpu.memory_space<vmem>>, %arg8: memref<8x1xf32, #tpu.memory_space<vmem>>, %arg9: memref<8x1xf32, #tpu.memory_space<vmem>>, %arg10: memref<8x1xf32, #tpu.memory_space<vmem>>) attributes {dimension_semantics = [#tpu.dimension_semantics<parallel>, #tpu.dimension_semantics<arbitrary>], iteration_bounds = array<i64: 1, 1>, scalar_prefetch = 0 : i64, scratch_operands = 5 : i64, tpu.core_type = #tpu.core_type<tc>, window_params = [{transform_indices = @transform_0, window_bounds = array<i64: 8, 256>}, {transform_indices = @transform_1, window_bounds = array<i64: 8, 256>}, {transform_indices = @transform_2, window_bounds = array<i64: 8, 256>}, {transform_indices = @transform_3, window_bounds = array<i64: 8, 128>}]} {
    %c0_i32 = arith.constant 0 : i32
    %0 = arith.cmpi eq, %arg1, %c0_i32 : i32
    %1 = arith.extui %0 : i1 to i32
    %c0_i32_0 = arith.constant 0 : i32
    %2 = arith.cmpi ne, %1, %c0_i32_0 : i32
    scf.if %2 {
      %cst_32 = arith.constant 0.000000e+00 : f32
      %37 = vector.broadcast %cst_32 : f32 to vector<8x1xf32>
      %c0_33 = arith.constant 0 : index
      %c0_34 = arith.constant 0 : index
      %38 = vector.load %arg6[%c0_33, %c0_34] : memref<8x1xf32, #tpu.memory_space<vmem>>, vector<8x1xf32>
      tpu.vector_store %arg6[%c0_33, %c0_34], %37 {strides = array<i32>} : memref<8x1xf32, #tpu.memory_space<vmem>>, vector<8x1xf32>,
      %cst_35 = arith.constant 0.000000e+00 : f32
      %39 = vector.broadcast %cst_35 : f32 to vector<8x1xf32>
      %c0_36 = arith.constant 0 : index
      %c0_37 = arith.constant 0 : index
      %40 = vector.load %arg7[%c0_36, %c0_37] : memref<8x1xf32, #tpu.memory_space<vmem>>, vector<8x1xf32>
      tpu.vector_store %arg7[%c0_36, %c0_37], %39 {strides = array<i32>} : memref<8x1xf32, #tpu.memory_space<vmem>>, vector<8x1xf32>,
      %cst_38 = arith.constant 0.000000e+00 : f32
      %41 = vector.broadcast %cst_38 : f32 to vector<8x1xf32>
      %c0_39 = arith.constant 0 : index
      %c0_40 = arith.constant 0 : index
      %42 = vector.load %arg8[%c0_39, %c0_40] : memref<8x1xf32, #tpu.memory_space<vmem>>, vector<8x1xf32>
      tpu.vector_store %arg8[%c0_39, %c0_40], %41 {strides = array<i32>} : memref<8x1xf32, #tpu.memory_space<vmem>>, vector<8x1xf32>,
      %cst_41 = arith.constant 0xFF800000 : f32
      %43 = vector.broadcast %cst_41 : f32 to vector<8x1xf32>
      %c0_42 = arith.constant 0 : index
      %c0_43 = arith.constant 0 : index
      %44 = vector.load %arg9[%c0_42, %c0_43] : memref<8x1xf32, #tpu.memory_space<vmem>>, vector<8x1xf32>
      tpu.vector_store %arg9[%c0_42, %c0_43], %43 {strides = array<i32>} : memref<8x1xf32, #tpu.memory_space<vmem>>, vector<8x1xf32>,
      %cst_44 = arith.constant 0xFF800000 : f32
      %45 = vector.broadcast %cst_44 : f32 to vector<8x1xf32>
      %c0_45 = arith.constant 0 : index
      %c0_46 = arith.constant 0 : index
      %46 = vector.load %arg10[%c0_45, %c0_46] : memref<8x1xf32, #tpu.memory_space<vmem>>, vector<8x1xf32>
      tpu.vector_store %arg10[%c0_45, %c0_46], %45 {strides = array<i32>} : memref<8x1xf32, #tpu.memory_space<vmem>>, vector<8x1xf32>,
    } else {
    }
    %c0 = arith.constant 0 : index
    %c0_1 = arith.constant 0 : index
    %3 = vector.load %arg2[%c0, %c0_1] : memref<8x256xf32, #tpu.memory_space<vmem>>, vector<8x256xf32>
    %c0_2 = arith.constant 0 : index
    %c0_3 = arith.constant 0 : index
    %4 = vector.load %arg3[%c0_2, %c0_3] : memref<8x256xf32, #tpu.memory_space<vmem>>, vector<8x256xf32>
    %c0_4 = arith.constant 0 : index
    %c0_5 = arith.constant 0 : index
    %5 = vector.load %arg4[%c0_4, %c0_5] : memref<8x256xf32, #tpu.memory_space<vmem>>, vector<8x256xf32>
    %6 = arith.mulf %4, %3 : vector<8x256xf32>
    %7 = arith.subf %3, %6 : vector<8x256xf32>
    %8 = arith.subf %4, %6 : vector<8x256xf32>
    %c0_6 = arith.constant 0 : index
    %c0_7 = arith.constant 0 : index
    %9 = vector.load %arg6[%c0_6, %c0_7] : memref<8x1xf32, #tpu.memory_space<vmem>>, vector<8x1xf32>
    %cst = arith.constant dense<0.000000e+00> : vector<8xf32>
    %10 = vector.multi_reduction <add>, %6, %cst [1] : vector<8x256xf32> to vector<8xf32>
    %11 = vector.shape_cast %10 : vector<8xf32> to vector<8x1xf32>
    %12 = arith.addf %9, %11 : vector<8x1xf32>
    %c0_8 = arith.constant 0 : index
    %c0_9 = arith.constant 0 : index
    %13 = vector.load %arg6[%c0_8, %c0_9] : memref<8x1xf32, #tpu.memory_space<vmem>>, vector<8x1xf32>
    tpu.vector_store %arg6[%c0_8, %c0_9], %12 {strides = array<i32>} : memref<8x1xf32, #tpu.memory_space<vmem>>, vector<8x1xf32>,
    %c0_10 = arith.constant 0 : index
    %c0_11 = arith.constant 0 : index
    %14 = vector.load %arg7[%c0_10, %c0_11] : memref<8x1xf32, #tpu.memory_space<vmem>>, vector<8x1xf32>
    %cst_12 = arith.constant dense<0.000000e+00> : vector<8xf32>
    %15 = vector.multi_reduction <add>, %7, %cst_12 [1] : vector<8x256xf32> to vector<8xf32>
    %16 = vector.shape_cast %15 : vector<8xf32> to vector<8x1xf32>
    %17 = arith.addf %14, %16 : vector<8x1xf32>
    %c0_13 = arith.constant 0 : index
    %c0_14 = arith.constant 0 : index
    %18 = vector.load %arg7[%c0_13, %c0_14] : memref<8x1xf32, #tpu.memory_space<vmem>>, vector<8x1xf32>
    tpu.vector_store %arg7[%c0_13, %c0_14], %17 {strides = array<i32>} : memref<8x1xf32, #tpu.memory_space<vmem>>, vector<8x1xf32>,
    %c0_15 = arith.constant 0 : index
    %c0_16 = arith.constant 0 : index
    %19 = vector.load %arg8[%c0_15, %c0_16] : memref<8x1xf32, #tpu.memory_space<vmem>>, vector<8x1xf32>
    %cst_17 = arith.constant dense<0.000000e+00> : vector<8xf32>
    %20 = vector.multi_reduction <add>, %8, %cst_17 [1] : vector<8x256xf32> to vector<8xf32>
    %21 = vector.shape_cast %20 : vector<8xf32> to vector<8x1xf32>
    %22 = arith.addf %19, %21 : vector<8x1xf32>
    %c0_18 = arith.constant 0 : index
    %c0_19 = arith.constant 0 : index
    %23 = vector.load %arg8[%c0_18, %c0_19] : memref<8x1xf32, #tpu.memory_space<vmem>>, vector<8x1xf32>
    tpu.vector_store %arg8[%c0_18, %c0_19], %22 {strides = array<i32>} : memref<8x1xf32, #tpu.memory_space<vmem>>, vector<8x1xf32>,
    %c0_20 = arith.constant 0 : index
    %c0_21 = arith.constant 0 : index
    %24 = vector.load %arg9[%c0_20, %c0_21] : memref<8x1xf32, #tpu.memory_space<vmem>>, vector<8x1xf32>
    %cst_22 = arith.constant dense<0xFF800000> : vector<8xf32>
    %25 = vector.multi_reduction <maximumf>, %4, %cst_22 [1] : vector<8x256xf32> to vector<8xf32>
    %26 = vector.shape_cast %25 : vector<8xf32> to vector<8x1xf32>
    %27 = arith.maximumf %24, %26 : vector<8x1xf32>
    %c0_23 = arith.constant 0 : index
    %c0_24 = arith.constant 0 : index
    %28 = vector.load %arg9[%c0_23, %c0_24] : memref<8x1xf32, #tpu.memory_space<vmem>>, vector<8x1xf32>
    tpu.vector_store %arg9[%c0_23, %c0_24], %27 {strides = array<i32>} : memref<8x1xf32, #tpu.memory_space<vmem>>, vector<8x1xf32>,
    %c0_25 = arith.constant 0 : index
    %c0_26 = arith.constant 0 : index
    %29 = vector.load %arg10[%c0_25, %c0_26] : memref<8x1xf32, #tpu.memory_space<vmem>>, vector<8x1xf32>
    %cst_27 = arith.constant dense<0xFF800000> : vector<8xf32>
    %30 = vector.multi_reduction <maximumf>, %5, %cst_27 [1] : vector<8x256xf32> to vector<8xf32>
    %31 = vector.shape_cast %30 : vector<8xf32> to vector<8x1xf32>
    %32 = arith.maximumf %29, %31 : vector<8x1xf32>
    %c0_28 = arith.constant 0 : index
    %c0_29 = arith.constant 0 : index
    %33 = vector.load %arg10[%c0_28, %c0_29] : memref<8x1xf32, #tpu.memory_space<vmem>>, vector<8x1xf32>
    tpu.vector_store %arg10[%c0_28, %c0_29], %32 {strides = array<i32>} : memref<8x1xf32, #tpu.memory_space<vmem>>, vector<8x1xf32>,
    %c0_i32_30 = arith.constant 0 : i32
    %34 = arith.cmpi eq, %arg1, %c0_i32_30 : i32
    %35 = arith.extui %34 : i1 to i32
    %c0_i32_31 = arith.constant 0 : i32
    %36 = arith.cmpi ne, %35, %c0_i32_31 : i32
    scf.if %36 {
      %c0_32 = arith.constant 0 : index
      %c0_33 = arith.constant 0 : index
      %37 = vector.load %arg6[%c0_32, %c0_33] : memref<8x1xf32, #tpu.memory_space<vmem>>, vector<8x1xf32>
      %c0_34 = arith.constant 0 : index
      %c0_35 = arith.constant 0 : index
      %38 = vector.load %arg8[%c0_34, %c0_35] : memref<8x1xf32, #tpu.memory_space<vmem>>, vector<8x1xf32>
      %cst_36 = arith.constant 0.692307711 : f32
      %39 = vector.broadcast %cst_36 : f32 to vector<8x1xf32>
      %40 = arith.mulf %39, %38 : vector<8x1xf32>
      %41 = arith.addf %37, %40 : vector<8x1xf32>
      %c0_37 = arith.constant 0 : index
      %c0_38 = arith.constant 0 : index
      %42 = vector.load %arg7[%c0_37, %c0_38] : memref<8x1xf32, #tpu.memory_space<vmem>>, vector<8x1xf32>
      %cst_39 = arith.constant 0.307692319 : f32
      %43 = vector.broadcast %cst_39 : f32 to vector<8x1xf32>
      %44 = arith.mulf %43, %42 : vector<8x1xf32>
      %45 = arith.addf %41, %44 : vector<8x1xf32>
      %46 = arith.divf %37, %45 : vector<8x1xf32>
      %cst_40 = arith.constant 1.000000e+00 : f32
      %47 = vector.broadcast %cst_40 : f32 to vector<8x1xf32>
      %48 = arith.subf %47, %46 : vector<8x1xf32>
      %c0_41 = arith.constant 0 : index
      %c0_42 = arith.constant 0 : index
      %49 = vector.load %arg9[%c0_41, %c0_42] : memref<8x1xf32, #tpu.memory_space<vmem>>, vector<8x1xf32>
      %cst_43 = arith.constant 0.000000e+00 : f32
      %50 = vector.broadcast %cst_43 : f32 to vector<8x1xf32>
      %51 = arith.cmpf oeq, %49, %50 : vector<8x1xf32>
      %c0_44 = arith.constant 0 : index
      %c0_45 = arith.constant 0 : index
      %52 = vector.load %arg10[%c0_44, %c0_45] : memref<8x1xf32, #tpu.memory_space<vmem>>, vector<8x1xf32>
      %cst_46 = arith.constant 0.000000e+00 : f32
      %53 = vector.broadcast %cst_46 : f32 to vector<8x1xf32>
      %54 = arith.cmpf oeq, %52, %53 : vector<8x1xf32>
      %55 = arith.andi %51, %54 : vector<8x1xi1>
      %cst_47 = arith.constant 0.000000e+00 : f32
      %56 = vector.broadcast %cst_47 : f32 to vector<8x1xf32>
      %57 = arith.select %55, %56, %48 : vector<8x1xi1>, vector<8x1xf32>
      %58 = vector.shape_cast %57 : vector<8x1xf32> to vector<8x1xf32>
      %59 = vector.broadcast %58 : vector<8x1xf32> to vector<8x128xf32>
      %c0_48 = arith.constant 0 : index
      %c0_49 = arith.constant 0 : index
      %60 = vector.load %arg5[%c0_48, %c0_49] : memref<8x128xf32, #tpu.memory_space<vmem>>, vector<8x128xf32>
      tpu.vector_store %arg5[%c0_48, %c0_49], %59 {strides = array<i32>} : memref<8x128xf32, #tpu.memory_space<vmem>>, vector<8x128xf32>,
    } else {
    }
    return
  }
  func.func @transform_0(%arg0: i32, %arg1: i32) -> (i32, i32) {
    %c0_i32 = arith.constant 0 : i32
    return %arg0, %arg1 : i32, i32
  }
  func.func @transform_1(%arg0: i32, %arg1: i32) -> (i32, i32) {
    %c0_i32 = arith.constant 0 : i32
    return %arg0, %arg1 : i32, i32
  }
  func.func @transform_2(%arg0: i32, %arg1: i32) -> (i32, i32) {
    %c0_i32 = arith.constant 0 : i32
    return %arg0, %arg1 : i32, i32
  }
  func.func @transform_3(%arg0: i32, %arg1: i32) -> (i32, i32) {
    %c0_i32 = arith.constant 0 : i32
    %c0_i32_0 = arith.constant 0 : i32
    return %arg0, %c0_i32 : i32, i32
  }
}

</mosaic_0001>

<llo_original>
// kernel: tpu_custom_call.1
$region0: #{tpu_custom_call.1}
  #allocation0 [shape = 'u32[]', space=smem, size = 0x4, offset = 0x4, fixed_abs, tag = 'smem constant byte address 0x4 - core index']
  #allocation1 [shape = 'u32[144,128]{1,0:T(1,128)}', space=vmem, size = 0x12000, scoped, tag = 'internal scratch']
  #allocation2 [shape = 'f32[8,1]{1,0:T(8,128)}', space=vmem, size = 0x1000, scoped, tag = 'scratch operand']
  #allocation3 [shape = 'f32[8,1]{1,0:T(8,128)}', space=vmem, size = 0x1000, scoped, tag = 'scratch operand']
  #allocation4 [shape = 'f32[8,1]{1,0:T(8,128)}', space=vmem, size = 0x1000, scoped, tag = 'scratch operand']
  #allocation5 [shape = 'f32[8,1]{1,0:T(8,128)}', space=vmem, size = 0x1000, scoped, tag = 'scratch operand']
  #allocation6 [shape = 'f32[8,1]{1,0:T(8,128)}', space=vmem, size = 0x1000, scoped, tag = 'scratch operand']
  %s0 = inlined_call_operand.hbm [shape: f32[8,256], index: 0, kind: input, shape index: {}]
  %s1 = inlined_call_operand.hbm [shape: f32[8,256], index: 1, kind: input, shape index: {}]
  %s2 = inlined_call_operand.hbm [shape: f32[8,256], index: 2, kind: input, shape index: {}]
  %s3 = inlined_call_operand.hbm [shape: f32[8,128], index: 3, kind: output, shape index: {}]
  %s4 = sld [smem:[#allocation0]]
  $region42: #{tpu_custom_call.1} parent=0
    _
  %s6 = ssub.s32 1, %s4
  %s7 = scalar_select 0, %s6, %s4
  $region1: #{tpu_custom_call.1} parent=0
    #allocation7 [shape = 'u8[8192]{0}', space=vmem, size = 0x2000, scoped, tag = 'input window, operand 0, single buffered']
    #allocation8 [shape = 's32[1]{0}', space=sflag, size = 0x4, scoped, tag = 'scoped memory for tpu_custom_call.1']
    #allocation9 [shape = 's32[1]{0}', space=sflag, size = 0x4, scoped, tag = 'scoped memory for tpu_custom_call.1']
    #allocation10 [shape = 'u8[8192]{0}', space=vmem, size = 0x2000, scoped, tag = 'input window, operand 1, single buffered']
    #allocation11 [shape = 's32[1]{0}', space=sflag, size = 0x4, scoped, tag = 'scoped memory for tpu_custom_call.1']
    #allocation12 [shape = 'u8[8192]{0}', space=vmem, size = 0x2000, scoped, tag = 'input window, operand 2, single buffered']
    #allocation13 [shape = 'u8[4096]{0}', space=vmem, size = 0x1000, scoped, tag = 'output window, operand 0, single buffered']
    %8 = vsyncpa [#allocation8], 0
    %9 = vsyncpa [#allocation11], 0
    %10 = vsyncpa [#allocation9], 0
    // Predicated region
    $region2: #{tpu_custom_call.1} parent=1 // pred_check
      _
    $region3: #{tpu_custom_call.1} parent=1 // pred_check_branch
      %12 = sbr.rel (0) target = $region5
    $region4: #{tpu_custom_call.1} parent=1 // pred_region
      %s14 = ssub.s32 256, 256
      %15 = vsyncadd [#allocation8], %s14
      %s17 = sshll.u32 [#allocation7], 4
      %s18 = int_to_ptr.vmem [resolvable:$true] %s17
      %20 = dma.hbm_to_vmem [thread:$0]  %s0, 256, %s18, [#allocation8]
    $region5: #{tpu_custom_call.1} parent=1 // pred_fallthru
      _
    // Predicated region
    $region6: #{tpu_custom_call.1} parent=1 // pred_check
      _
    $region7: #{tpu_custom_call.1} parent=1 // pred_check_branch
      %22 = sbr.rel (0) target = $region9
    $region8: #{tpu_custom_call.1} parent=1 // pred_region
      %s24 = ssub.s32 256, 256
      %25 = vsyncadd [#allocation11], %s24
      %s27 = sshll.u32 [#allocation10], 4
      %s28 = int_to_ptr.vmem [resolvable:$true] %s27
      %30 = dma.hbm_to_vmem [thread:$0]  %s1, 256, %s28, [#allocation11]
    $region9: #{tpu_custom_call.1} parent=1 // pred_fallthru
      _
    // Predicated region
    $region10: #{tpu_custom_call.1} parent=1 // pred_check
      _
    $region11: #{tpu_custom_call.1} parent=1 // pred_check_branch
      %32 = sbr.rel (0) target = $region13
    $region12: #{tpu_custom_call.1} parent=1 // pred_region
      %s34 = ssub.s32 256, 256
      %35 = vsyncadd [#allocation11], %s34
      %s37 = sshll.u32 [#allocation12], 4
      %s38 = int_to_ptr.vmem [resolvable:$true] %s37
      %40 = dma.hbm_to_vmem [thread:$0]  %s2, 256, %s38, [#allocation11]
    $region13: #{tpu_custom_call.1} parent=1 // pred_fallthru
      _
    // Predicated region
    $region14: #{tpu_custom_call.1} parent=1 // pred_check
      _
    $region15: #{tpu_custom_call.1} parent=1 // pred_check_branch
      %42 = sbr.rel (0) target = $region17
    $region16: #{tpu_custom_call.1} parent=1 // pred_region
      %43 = dma.done [#allocation8], 256
    $region17: #{tpu_custom_call.1} parent=1 // pred_fallthru
      _
    // Predicated region
    $region18: #{tpu_custom_call.1} parent=1 // pred_check
      _
    $region19: #{tpu_custom_call.1} parent=1 // pred_check_branch
      %45 = sbr.rel (0) target = $region21
    $region20: #{tpu_custom_call.1} parent=1 // pred_region
      %46 = dma.done [#allocation11], 256
    $region21: #{tpu_custom_call.1} parent=1 // pred_fallthru
      _
    // Predicated region
    $region22: #{tpu_custom_call.1} parent=1 // pred_check
      _
    $region23: #{tpu_custom_call.1} parent=1 // pred_check_branch
      %48 = sbr.rel (0) target = $region25
    $region24: #{tpu_custom_call.1} parent=1 // pred_region
      %49 = dma.done [#allocation11], 256
    $region25: #{tpu_custom_call.1} parent=1 // pred_fallthru
      _
    %p50 = scmp.eq.s32.totalorder 0, 0
    // Predicated region
    $region26: #{tpu_custom_call.1} parent=1 // pred_check
      %p51 = pneg %p50
    $region27: #{tpu_custom_call.1} parent=1 // pred_check_branch
      %53 = sbr.rel (%p51) target = $region29
    $region28: #{tpu_custom_call.1} parent=1 // pred_region
      %vm54 = vcmask 7168
      %55 = vst.msk [vmem:[#allocation2] sm:$0xff] %vm54, 0.0
      %56 = vst.msk [vmem:[#allocation3] sm:$0xff] %vm54, 0.0
      %57 = vst.msk [vmem:[#allocation4] sm:$0xff] %vm54, 0.0
      %58 = vst.msk [vmem:[#allocation5] sm:$0xff] %vm54, -inf
      %59 = vst.msk [vmem:[#allocation6] sm:$0xff] %vm54, -inf
    $region29: #{tpu_custom_call.1} parent=1 // pred_fallthru
      _
    %v60 = vld [vmem:[#allocation7] sm:$0xff]
    %v61 = vld [vmem:[#allocation7 + $0x8] sm:$0xff]
    %v62 = vld [vmem:[#allocation10] sm:$0xff]
    %v63 = vld [vmem:[#allocation10 + $0x8] sm:$0xff]
    %v64 = vld [vmem:[#allocation12] sm:$0xff]
    %v65 = vld [vmem:[#allocation12 + $0x8] sm:$0xff]
    %v66 = vmul.f32 %v62, %v60
    %v67 = vmul.f32 %v63, %v61
    %v68 = vsub.f32 %v60, %v66
    %v69 = vsub.f32 %v61, %v67
    %v70 = vsub.f32 %v62, %v66
    %v71 = vsub.f32 %v63, %v67
    %v72 = vld [vmem:[#allocation2] sm:$0xff]
    %v73 = vadd.f32 %v66, %v67
    %74 = vadd.xlane.f32.xlu0 %v73
    %v75 = vpop.xlane.xlu0 %74
    %v76 = vadd.f32 %v72, %v75
    %vm77 = vcmask 7168
    %78 = vst.msk [vmem:[#allocation2] sm:$0xff] %vm77, %v76
    %v79 = vld [vmem:[#allocation3] sm:$0xff]
    %v80 = vadd.f32 %v68, %v69
    %81 = vadd.xlane.f32.xlu0 %v80
    %v82 = vpop.xlane.xlu0 %81
    %v83 = vadd.f32 %v79, %v82
    %84 = vst.msk [vmem:[#allocation3] sm:$0xff] %vm77, %v83
    %v85 = vld [vmem:[#allocation4] sm:$0xff]
    %v86 = vadd.f32 %v70, %v71
    %87 = vadd.xlane.f32.xlu0 %v86
    %v88 = vpop.xlane.xlu0 %87
    %v89 = vadd.f32 %v85, %v88
    %90 = vst.msk [vmem:[#allocation4] sm:$0xff] %vm77, %v89
    %v91 = vld [vmem:[#allocation5] sm:$0xff]
    %v92 = vmax.f32 %v62, %v63
    %93 = vmax.xlane.f32.xlu0 %v92
    %v94 = vpop.xlane.xlu0 %93
    %v95 = vmax.f32 %v91, %v94
    %96 = vst.msk [vmem:[#allocation5] sm:$0xff] %vm77, %v95
    %v97 = vld [vmem:[#allocation6] sm:$0xff]
    %v98 = vmax.f32 %v64, %v65
    %99 = vmax.xlane.f32.xlu0 %v98
    %v100 = vpop.xlane.xlu0 %99
    %v101 = vmax.f32 %v97, %v100
    %102 = vst.msk [vmem:[#allocation6] sm:$0xff] %vm77, %v101
    // Predicated region
    $region30: #{tpu_custom_call.1} parent=1 // pred_check
      %p103 = pneg %p50
    $region31: #{tpu_custom_call.1} parent=1 // pred_check_branch
      %105 = sbr.rel (%p103) target = $region33
    $region32: #{tpu_custom_call.1} parent=1 // pred_region
      %v106 = vld [vmem:[#allocation2] sm:$0xff]
      %v107 = vld [vmem:[#allocation4] sm:$0xff]
      %v108 = vmul.f32 %v107, 0.6923077
      %v109 = vadd.f32 %v106, %v108
      %v110 = vld [vmem:[#allocation3] sm:$0xff]
      %v111 = vmul.f32 %v110, 0.30769232
      %v112 = vadd.f32 %v109, %v111
      %v113 = vrcp.pop %v112
      %v114 = vmul.f32 %v106, %v113
      %v115 = vsub.f32 1.0, %v114
      %v116 = vld [vmem:[#allocation5] sm:$0xff]
      %vm117 = vcmp.eq.f32.partialorder %v116, 0.0
      %v118 = vld [vmem:[#allocation6] sm:$0xff]
      %vm119 = vcmp.eq.f32.partialorder %v118, 0.0
      %vm120 = vmand %vm117, %vm119
      %v121 = vsel %vm120, 0.0, %v115
      %123 = vset.pattern.permute.xlu0 0
      %124 = vperm.xlu0 %123, %v121
      %v125 = vpop.permute.xlu0 %124
      %127 = vst [vmem:[#allocation13] sm:$0xff] %v125
    $region33: #{tpu_custom_call.1} parent=1 // pred_fallthru
      _
    // Predicated region
    $region34: #{tpu_custom_call.1} parent=1 // pred_check
      _
    $region35: #{tpu_custom_call.1} parent=1 // pred_check_branch
      %129 = sbr.rel (0) target = $region37
    $region36: #{tpu_custom_call.1} parent=1 // pred_region
      %s131 = ssub.s32 128, 128
      %132 = vsyncadd [#allocation9], %s131
      %s134 = sshll.u32 [#allocation13], 4
      %s135 = int_to_ptr.vmem [resolvable:$true] %s134
      %137 = dma.vmem_to_hbm [thread:$0]  %s135, 128, %s3, [#allocation9]
    $region37: #{tpu_custom_call.1} parent=1 // pred_fallthru
      _
    // Predicated region
    $region38: #{tpu_custom_call.1} parent=1 // pred_check
      _
    $region39: #{tpu_custom_call.1} parent=1 // pred_check_branch
      %139 = sbr.rel (0) target = $region41
    $region40: #{tpu_custom_call.1} parent=1 // pred_region
      %140 = dma.done [#allocation9], 128
    $region41: #{tpu_custom_call.1} parent=1 // pred_fallthru
      _
    %141 = vsyncpa [#allocation8], 1
    %142 = vsyncpa [#allocation11], 1
    %143 = vsyncpa [#allocation9], 1

</llo_original>
